<compile_context>
chip_gen: v7x
topology: tpu7x:2x2x1
jax: 0.10.0
libtpu: 0.0.40
codegen_flags: <defaults>
</compile_context>

<pallas_src>
import functools

import jax
import jax.numpy as jnp
from jax.experimental import pallas as pl
from jax.experimental.pallas import tpu as pltpu


NUM_ATTR_SLOTS = 3  # the module hard-codes 3 attributes per example


# ----------------------------- Pallas kernel -------------------------------

def encoder_kernel(ids_ref, w_ref, b_ref, out_ref, *, max_attr):
    """Whole encoder in one MXU pass.

    ids_ref : (Bp, 3)            int32 attribute ids (batch padded to mult. of 8)
    w_ref   : (3*maxAttr, L*H*2) fused weight = blockdiag(emb @ w1.T) @ w2.T
    b_ref   : (1, L*H*2)         fc2 bias
    out_ref : (Bp, L*H*2)        tanh(onehot(ids) @ W + b)
    """
    ids = ids_ref[...]                                     # (Bp, 3) int32
    bp = ids.shape[0]
    k = w_ref.shape[0]                                     # 3 * maxAttr

    # Build the (Bp, 3*maxAttr) one-hot on the VPU: lane iota + 3 compares.
    col = jax.lax.broadcasted_iota(jnp.int32, (bp, k), 1)
    onehot = jnp.zeros((bp, k), jnp.float32)
    for s in range(NUM_ATTR_SLOTS):                        # unrolled; slots disjoint
        onehot += (col == ids[:, s:s + 1] + s * max_attr).astype(jnp.float32)

    # Single fused matmul (embedding + fc1 + fc2), bias on VPU, tanh on EUP.
    logits = jnp.dot(onehot, w_ref[...], preferred_element_type=jnp.float32)
    logits = logits + b_ref[...]
    out_ref[...] = jnp.tanh(logits).astype(out_ref.dtype)


def encoder_pallas(ids_padded, w_total, b2, *, max_attr):
    bp = ids_padded.shape[0]
    out_dim = w_total.shape[1]
    kernel = functools.partial(encoder_kernel, max_attr=max_attr)
    # No grid: the whole problem is a couple of vregs; a 1-step grid would only
    # add pipeline setup and double-buffer the (tiny) weights.
    return pl.pallas_call(
        kernel,
        out_shape=jax.ShapeDtypeStruct((bp, out_dim), jnp.float32),
        in_specs=[
            pl.BlockSpec(memory_space=pltpu.MemorySpace.VMEM),
            pl.BlockSpec(memory_space=pltpu.MemorySpace.VMEM),
            pl.BlockSpec(memory_space=pltpu.MemorySpace.VMEM),
        ],
        out_specs=pl.BlockSpec(memory_space=pltpu.MemorySpace.VMEM),
    )(ids_padded, w_total, b2)


# ------------------------------ Encoder model ------------------------------

class EncoderConfig:
    maxAttr = 16      # embedding vocab size
    attrEmbDim = 8    # E
    dHidden = 32      # H
    lstmLayer = 2     # L (so fc2 output = L*H*2 = 4H and view(-1,2,2H) keeps batch)
    drop = 0.1        # unused in forward


def init_params(cfg, key):
    k_emb, k_w1, k_w2, k_b2 = jax.random.split(key, 4)
    emb = jax.random.normal(k_emb, (cfg.maxAttr, cfg.attrEmbDim), jnp.float32) * 0.1
    # torch Linear weight layout is (out, in)
    w1 = jax.random.normal(k_w1, (cfg.dHidden, cfg.attrEmbDim), jnp.float32) * 0.1
    w2 = jax.random.normal(
        k_w2, (cfg.lstmLayer * cfg.dHidden * 2, 3 * cfg.dHidden), jnp.float32) * 0.1
    b2 = jax.random.normal(k_b2, (cfg.lstmLayer * cfg.dHidden * 2,), jnp.float32) * 0.1
    return dict(emb=emb, w1=w1, w2=w2, b2=b2)


def prepare_fused(cfg, params):
    """One-time fusion of Embedding -> fc1 -> fc2 into a single weight.

    Run once at load time; the forward pass never re-builds weights.
    """
    E, H, A = cfg.attrEmbDim, cfg.dHidden, cfg.maxAttr
    ew = params["emb"] @ params["w1"].T                      # (A, H)  emb . fc1
    w_block = jnp.zeros((NUM_ATTR_SLOTS * A, NUM_ATTR_SLOTS * H), jnp.float32)
    for s in range(NUM_ATTR_SLOTS):                          # block-diag == view(-1,3H)
        w_block = w_block.at[s * A:(s + 1) * A, s * H:(s + 1) * H].set(ew)
    w_total = w_block @ params["w2"].T                       # (3A, L*H*2) = (48, 128)
    b2 = params["b2"].reshape(1, -1)                         # (1, L*H*2)
    return w_total, b2


def encoder_forward(cfg, w_total, b2, x_ids):
    """x_ids: int (B, 3). Returns [h0, c0], each (lstmLayer, B, dHidden)."""
    H = cfg.dHidden
    B = x_ids.shape[0]

    # Sublane-align the batch (f32 sublane = 8); padded rows use id 0 and are
    # sliced off before the view(-1,2,2H)/split/transpose glue.
    bp = ((B + 7) // 8) * 8
    ids = x_ids.astype(jnp.int32)
    if bp != B:
        ids = jnp.pad(ids, ((0, bp - B), (0, 0)))

    out = encoder_pallas(ids, w_total, b2, max_attr=cfg.maxAttr)   # (bp, 4H)
    out = out[:B]

    # --- layout glue, matching torch exactly ---
    hid = out.reshape(-1, 2, 2 * H)                          # .view(-1, 2, 2H)
    parts = jnp.split(hid, 2, axis=2)                        # split(dim=2, size=H)
    return [jnp.transpose(p, (1, 0, 2)) for p in parts]      # transpose(0,1) each


def encoder_reference(cfg, params, x_ids):
    """Pure-JAX reference mirroring the torch forward for verification."""
    H = cfg.dHidden
    x = jnp.take(params["emb"], x_ids, axis=0)               # (B, 3, E)
    hid = jnp.einsum("bse,he->bsh", x, params["w1"])          # fc1, no bias
    hid = hid.reshape(-1, 3 * H)
    hid = jnp.tanh(hid @ params["w2"].T + params["b2"])
    hid = hid.reshape(-1, 2, 2 * H)
    parts = jnp.split(hid, 2, axis=2)
    return [jnp.transpose(p, (1, 0, 2)) for p in parts]


if __name__ == "__main__":
    cfg = EncoderConfig()
    params = init_params(cfg, jax.random.PRNGKey(42))

    # One-time weight fusion (hoisted out of the forward pass).
    w_total, b2 = prepare_fused(cfg, params)

    B = 4
    x_ids = jax.random.randint(jax.random.PRNGKey(0), (B, 3), 0, cfg.maxAttr,
                               dtype=jnp.int32)

    fwd = jax.jit(functools.partial(encoder_forward, cfg, w_total, b2))
    h0, c0 = fwd(x_ids)
    jax.block_until_ready(h0)
    jax.block_until_ready(c0)

    h0_ref, c0_ref = encoder_reference(cfg, params, x_ids)
    assert h0.shape == (cfg.lstmLayer, B, cfg.dHidden)
    assert c0.shape == (cfg.lstmLayer, B, cfg.dHidden)
    assert jnp.allclose(h0, h0_ref, atol=1e-5, rtol=1e-5)
    assert jnp.allclose(c0, c0_ref, atol=1e-5, rtol=1e-5)

    print("KERNEL_OK")
</pallas_src>

<mosaic_0001>
module attributes {stable_mosaic.version = 11 : i64} {
  func.func @encoder_kernel(%arg0: memref<8x3xi32, #tpu.memory_space<vmem>>, %arg1: memref<48x128xf32, #tpu.memory_space<vmem>>, %arg2: memref<1x128xf32, #tpu.memory_space<vmem>>, %arg3: memref<8x128xf32, #tpu.memory_space<vmem>>) attributes {dimension_semantics = [], scalar_prefetch = 0 : i64, scratch_operands = 0 : i64, tpu.core_type = #tpu.core_type<tc>} {
    %c0 = arith.constant 0 : index
    %c0_0 = arith.constant 0 : index
    %0 = vector.load %arg0[%c0, %c0_0] : memref<8x3xi32, #tpu.memory_space<vmem>>, vector<8x3xi32>
    %1 = tpu.iota {dimensions = array<i32: 1>} : vector<8x48xi32>
    %cst = arith.constant 0.000000e+00 : f32
    %2 = vector.broadcast %cst : f32 to vector<8x48xf32>
    %3 = vector.extract_strided_slice %0 {offsets = [0, 0], sizes = [8, 1], strides = [1, 1]} : vector<8x3xi32> to vector<8x1xi32>
    %c0_i32 = arith.constant 0 : i32
    %4 = vector.broadcast %c0_i32 : i32 to vector<8x1xi32>
    %5 = arith.addi %3, %4 : vector<8x1xi32>
    %6 = vector.broadcast %5 : vector<8x1xi32> to vector<8x48xi32>
    %7 = arith.cmpi eq, %1, %6 : vector<8x48xi32>
    %8 = arith.extui %7 : vector<8x48xi1> to vector<8x48xi32>
    %9 = arith.sitofp %8 : vector<8x48xi32> to vector<8x48xf32>
    %10 = arith.addf %2, %9 : vector<8x48xf32>
    %11 = vector.extract_strided_slice %0 {offsets = [0, 1], sizes = [8, 1], strides = [1, 1]} : vector<8x3xi32> to vector<8x1xi32>
    %c16_i32 = arith.constant 16 : i32
    %12 = vector.broadcast %c16_i32 : i32 to vector<8x1xi32>
    %13 = arith.addi %11, %12 : vector<8x1xi32>
    %14 = vector.broadcast %13 : vector<8x1xi32> to vector<8x48xi32>
    %15 = arith.cmpi eq, %1, %14 : vector<8x48xi32>
    %16 = arith.extui %15 : vector<8x48xi1> to vector<8x48xi32>
    %17 = arith.sitofp %16 : vector<8x48xi32> to vector<8x48xf32>
    %18 = arith.addf %10, %17 : vector<8x48xf32>
    %19 = vector.extract_strided_slice %0 {offsets = [0, 2], sizes = [8, 1], strides = [1, 1]} : vector<8x3xi32> to vector<8x1xi32>
    %c32_i32 = arith.constant 32 : i32
    %20 = vector.broadcast %c32_i32 : i32 to vector<8x1xi32>
    %21 = arith.addi %19, %20 : vector<8x1xi32>
    %22 = vector.broadcast %21 : vector<8x1xi32> to vector<8x48xi32>
    %23 = arith.cmpi eq, %1, %22 : vector<8x48xi32>
    %24 = arith.extui %23 : vector<8x48xi1> to vector<8x48xi32>
    %25 = arith.sitofp %24 : vector<8x48xi32> to vector<8x48xf32>
    %26 = arith.addf %18, %25 : vector<8x48xf32>
    %c0_1 = arith.constant 0 : index
    %c0_2 = arith.constant 0 : index
    %27 = vector.load %arg1[%c0_1, %c0_2] : memref<48x128xf32, #tpu.memory_space<vmem>>, vector<48x128xf32>
    %cst_3 = arith.constant dense<0.000000e+00> : vector<8x128xf32>
    %28 = tpu.matmul %26, %27, %cst_3 {dimension_numbers = #tpu.dot_dimension_numbers<[1], [0], [0], [1], [0, 0, 1, 1], [], []>} : vector<8x48xf32>, vector<48x128xf32>, vector<8x128xf32> -> vector<8x128xf32>
    %c0_4 = arith.constant 0 : index
    %c0_5 = arith.constant 0 : index
    %29 = vector.load %arg2[%c0_4, %c0_5] : memref<1x128xf32, #tpu.memory_space<vmem>>, vector<1x128xf32>
    %30 = vector.broadcast %29 : vector<1x128xf32> to vector<8x128xf32>
    %31 = arith.addf %28, %30 : vector<8x128xf32>
    %32 = math.tanh %31 : vector<8x128xf32>
    %c0_6 = arith.constant 0 : index
    %c0_7 = arith.constant 0 : index
    %33 = vector.load %arg3[%c0_6, %c0_7] : memref<8x128xf32, #tpu.memory_space<vmem>>, vector<8x128xf32>
    tpu.vector_store %arg3[%c0_6, %c0_7], %32 {strides = array<i32>} : memref<8x128xf32, #tpu.memory_space<vmem>>, vector<8x128xf32>,
    return
  }
}

</mosaic_0001>

<llo_original>
// kernel: encoder_forward.1
$region0: #{encoder_forward.1}
  #allocation0 [shape = 'u32[]', space=smem, size = 0x4, offset = 0x4, fixed_abs, tag = 'smem constant byte address 0x4 - core index']
  #allocation1 [shape = 'u32[144,128]{1,0:T(1,128)}', space=vmem, size = 0x12000, scoped, tag = 'internal scratch']
  %s0 = inlined_call_operand.vmem [shape: s32[8,3], index: 0, kind: input, shape index: {}]
  %s1 = inlined_call_operand.hbm [shape: f32[48,128], index: 1, kind: input, shape index: {}]
  %s2 = inlined_call_operand.vmem [shape: f32[1,128], index: 2, kind: input, shape index: {}]
  %s3 = inlined_call_operand.vmem [shape: f32[8,128], index: 3, kind: output, shape index: {}]
  %s4 = sld [smem:[#allocation0]]
  $region26: #{encoder_forward.1} parent=0
    _
  %s6 = ssub.s32 1, %s4
  %s7 = scalar_select 0, %s6, %s4
  $region1: #{encoder_forward.1} parent=0
    #allocation2 [shape = 'u8[24576]{0}', space=vmem, size = 0x6000, scoped, tag = 'input window, operand 1, single buffered']
    #allocation3 [shape = 's32[1]{0}', space=sflag, size = 0x4, scoped, tag = 'scoped memory for encoder_forward.1']
    %8 = vsyncpa [#allocation3], 0
    // Predicated region
    $region2: #{encoder_forward.1} parent=1 // pred_check
      _
    $region3: #{encoder_forward.1} parent=1 // pred_check_branch
      %10 = sbr.rel (0) target = $region5
    $region4: #{encoder_forward.1} parent=1 // pred_region
      _
    $region5: #{encoder_forward.1} parent=1 // pred_fallthru
      _
    // Predicated region
    $region6: #{encoder_forward.1} parent=1 // pred_check
      _
    $region7: #{encoder_forward.1} parent=1 // pred_check_branch
      %12 = sbr.rel (0) target = $region9
    $region8: #{encoder_forward.1} parent=1 // pred_region
      %s14 = ssub.s32 768, 768
      %15 = vsyncadd [#allocation3], %s14
      %s16 = sshll.u32 [#allocation2], 4
      %s17 = int_to_ptr.vmem [resolvable:$true] %s16
      %22 = dma.hbm_to_vmem [thread:$0]  %s1, 768, %s17, [#allocation3], 128, 128, 8
    $region9: #{encoder_forward.1} parent=1 // pred_fallthru
      _
    // Predicated region
    $region10: #{encoder_forward.1} parent=1 // pred_check
      _
    $region11: #{encoder_forward.1} parent=1 // pred_check_branch
      %24 = sbr.rel (0) target = $region13
    $region12: #{encoder_forward.1} parent=1 // pred_region
      _
    $region13: #{encoder_forward.1} parent=1 // pred_fallthru
      _
    // Predicated region
    $region14: #{encoder_forward.1} parent=1 // pred_check
      _
    $region15: #{encoder_forward.1} parent=1 // pred_check_branch
      %26 = sbr.rel (0) target = $region17
    $region16: #{encoder_forward.1} parent=1 // pred_region
      %27 = dma.done [#allocation3], 768
    $region17: #{encoder_forward.1} parent=1 // pred_fallthru
      _
    %v28 = vld [vmem:[%s0] sm:$0xff]
    %v29 = vlaneseq
    %v30 = vand.u32 %v29, 127
    %31 = vset.pattern.permute.xlu0 0
    %32 = vperm.xlu0 %31, %v28
    %v33 = vpop.permute.xlu0 %32
    %vm34 = vcmp.eq.s32.totalorder %v30, %v33
    %v35 = vsel %vm34, 1, 0
    %v36 = vcvt.s32.f32 %v35
    %v37 = vadd.f32 %v36, 0.0
    %v38 = vadd.s32 %v28, 16
    %39 = vset.pattern.permute.xlu0 1
    %40 = vperm.xlu0 %39, %v38
    %v41 = vpop.permute.xlu0 %40
    %vm42 = vcmp.eq.s32.totalorder %v30, %v41
    %v43 = vsel %vm42, 1, 0
    %v44 = vcvt.s32.f32 %v43
    %v45 = vadd.f32 %v37, %v44
    %v46 = vadd.s32 %v28, 32
    %47 = vset.pattern.permute.xlu0 2
    %48 = vperm.xlu0 %47, %v46
    %v49 = vpop.permute.xlu0 %48
    %vm50 = vcmp.eq.s32.totalorder %v30, %v49
    %v51 = vsel %vm50, 1, 0
    %v52 = vcvt.s32.f32 %v51
    %v53 = vadd.f32 %v45, %v52
    %v54 = vld [vmem:[#allocation2] sm:$0xff]
    %v55 = vld [vmem:[#allocation2 + $0x8] sm:$0xff]
    %v56 = vld [vmem:[#allocation2 + $0x10] sm:$0xff]
    %v57 = vld [vmem:[#allocation2 + $0x18] sm:$0xff]
    %v58 = vld [vmem:[#allocation2 + $0x20] sm:$0xff]
    %v59 = vld [vmem:[#allocation2 + $0x28] sm:$0xff]
    %v60 = vld [vmem:[%s2] sm:$0x1]
    %v62 = vlaneseq
    %v63 = vshrl.u32 %v62, 7
    %v64 = vsub.s32 0, %v63
    %v65 = vrot.slane %v60, %v64
    %vm67 = vcmask 392192
    %v69 = vsel %vm67, %v53, 0
    %71 = vmatprep.subr.mxu0 0.0
    %72 = vmatpush1.msra.mxu0 %v54
    %73 = vmatprep.subr.mxu0 0.0
    %74 = vmatpush1.msra.mxu0 %v55
    %75 = vmatprep.subr.mxu0 0.0
    %76 = vmatpush1.msra.mxu0 %v56
    %77 = vmatprep.subr.mxu0 0.0
    %78 = vmatpush1.msra.mxu0 %v57
    %79 = vmatprep.subr.mxu0 0.0
    %80 = vmatpush1.msra.mxu0 %v58
    %81 = vmatprep.subr.mxu0 0.0
    %82 = vmatpush1.msra.mxu0 %v59
    %83 = vmatprep.subr.mxu0 0.0
    %84 = vmatpush1.msra.mxu0 0.0
    %85 = vmatprep.subr.mxu0 0.0
    %86 = vmatpush1.msra.mxu0 0.0
    %87 = vmatprep.subr.mxu0 0.0
    %88 = vmatpush1.msra.mxu0 0.0
    %89 = vmatprep.subr.mxu0 0.0
    %90 = vmatpush1.msra.mxu0 0.0
    %91 = vmatprep.subr.mxu0 0.0
    %92 = vmatpush1.msra.mxu0 0.0
    %93 = vmatprep.subr.mxu0 0.0
    %94 = vmatpush1.msra.mxu0 0.0
    %95 = vmatprep.subr.mxu0 0.0
    %96 = vmatpush1.msra.mxu0 0.0
    %97 = vmatprep.subr.mxu0 0.0
    %98 = vmatpush1.msra.mxu0 0.0
    %99 = vmatprep.subr.mxu0 0.0
    %100 = vmatpush1.msra.mxu0 0.0
    %101 = vmatprep.subr.mxu0 0.0
    %102 = vmatpush1.msra.mxu0 0.0
    %103 = vmatprep.subr.mxu0 0.0
    %104 = vmatpush1.msra.mxu0 0.0
    %105 = vmatprep.subr.mxu0 0.0
    %106 = vmatpush1.msra.mxu0 0.0
    %107 = vmatprep.subr.mxu0 0.0
    %108 = vmatpush1.msra.mxu0 0.0
    %109 = vmatprep.subr.mxu0 0.0
    %110 = vmatpush1.msra.mxu0 0.0
    %111 = vmatprep.subr.mxu0 0.0
    %112 = vmatpush1.msra.mxu0 0.0
    %113 = vmatprep.subr.mxu0 0.0
    %114 = vmatpush1.msra.mxu0 0.0
    %115 = vmatprep.subr.mxu0 0.0
    %116 = vmatpush1.msra.mxu0 0.0
    %117 = vmatprep.subr.mxu0 0.0
    %118 = vmatpush1.msra.mxu0 0.0
    %119 = vmatprep.subr.mxu0 0.0
    %120 = vmatpush1.msra.mxu0 0.0
    %121 = vmatprep.subr.mxu0 0.0
    %122 = vmatpush1.msra.mxu0 0.0
    %123 = vmatprep.subr.mxu0 0.0
    %124 = vmatpush1.msra.mxu0 0.0
    %125 = vmatprep.subr.mxu0 0.0
    %126 = vmatpush1.msra.mxu0 0.0
    %127 = vmatprep.subr.mxu0 0.0
    %128 = vmatpush1.msra.mxu0 0.0
    %129 = vmatprep.subr.mxu0 0.0
    %130 = vmatpush1.msra.mxu0 0.0
    %131 = vmatprep.subr.mxu0 0.0
    %132 = vmatpush1.msra.mxu0 0.0
    %133 = vmatprep.subr.mxu0 0.0
    %134 = vmatpush1.msra.mxu0 0.0
    %135 = vmatprep.mubr.f32.mxu0 0.0
    %136 = vmatmul.mubr.f32.gmra.mrb[0].mxu0 %v69
    %v137 = vpop.f32.mrb[0].mxu0
    %v138 = vadd.f32 %v65, %v137
    %v139 = vpop.f32.mrb[0].mxu0
    %140 = vdwg.mxu0
    %v141 = vtanh.pop %v138
    %142 = vst [vmem:[%s3] sm:$0xff] %v141
    // Predicated region
    $region18: #{encoder_forward.1} parent=1 // pred_check
      _
    $region19: #{encoder_forward.1} parent=1 // pred_check_branch
      %144 = sbr.rel (0) target = $region21
    $region20: #{encoder_forward.1} parent=1 // pred_region
      _
    $region21: #{encoder_forward.1} parent=1 // pred_fallthru
      _
    // Predicated region
    $region22: #{encoder_forward.1} parent=1 // pred_check
      _
    $region23: #{encoder_forward.1} parent=1 // pred_check_branch
      %146 = sbr.rel (0) target = $region25
    $region24: #{encoder_forward.1} parent=1 // pred_region
      _
    $region25: #{encoder_forward.1} parent=1 // pred_fallthru
      _
    %147 = vsyncpa [#allocation3], 1

</llo_original>
